<compile_context>
chip_gen: v5e
topology: v5e:2x2
jax: 0.10.0
libtpu: 0.0.40
codegen_flags: <defaults>
</compile_context>

<pallas_src>
import functools

import jax
import jax.numpy as jnp
from jax.experimental import pallas as pl
from jax.experimental.pallas import tpu as pltpu

LANE = 128
DEFAULT_TILE_B = 256   # tunable: ~512-1024 rows on v5e/v6e, ~128-256 on v7x (64 MiB VMEM/TC)


def _round_up(n, m):
    return ((n + m - 1) // m) * m


def _fold_bn(gamma, beta, running_mean, running_var, eps=1e-5):
    """Eval-mode BatchNorm1d -> per-feature affine (scale, shift), 1-D vectors."""
    scale = gamma / jnp.sqrt(running_var + eps)
    shift = beta - running_mean * scale
    return scale, shift


def _prepare_inputs(x, params, compute_dtype, tile_b):
    """Fold BN into Linears, fuse first+skip Linear, pad to lane/sublane-aligned shapes."""
    B, Cin = x.shape
    Cout, L = params["w2"].shape                       # torch layout (out, in)

    bn1_s, bn1_b = _fold_bn(params["bn1_g"], params["bn1_b"], params["bn1_rm"], params["bn1_rv"])
    bn2_s, bn2_b = _fold_bn(params["bn2_g"], params["bn2_b"], params["bn2_rm"], params["bn2_rv"])
    bns_s, bns_b = _fold_bn(params["bns_g"], params["bns_b"], params["bns_rm"], params["bns_rv"])

    # Transpose torch (out, in) -> (in, out) and fold the preceding BN affine into each Linear:
    #   (x*s + b) @ W + c  ==  x @ (s[:,None]*W) + (b @ W + c)
    w1 = params["w1"].T                                # (Cin, L)
    w1f = bn1_s[:, None] * w1
    b1f = bn1_b @ w1 + params["b1"]                    # (L,)

    w2 = params["w2"].T                                # (L, Cout)
    w2f = bn2_s[:, None] * w2
    b2f = bn2_b @ w2 + params["b2"]                    # (Cout,)

    ws = params["ws"].T                                # (Cin, Cout)
    wsf = bns_s[:, None] * ws
    bsf = bns_b @ ws + params["bs"]                    # (Cout,)

    # Lane-dense zero padding of feature dims (zero rows/cols contribute nothing).
    Cin_p = _round_up(Cin, LANE)
    L_p = _round_up(L, LANE)
    Cout_p = _round_up(Cout, LANE)

    def pad2(a, rows, cols):
        return jnp.pad(a, ((0, rows - a.shape[0]), (0, cols - a.shape[1])))

    w1f = pad2(w1f, Cin_p, L_p)
    wsf = pad2(wsf, Cin_p, Cout_p)
    w2f = pad2(w2f, L_p, Cout_p)
    b1f = jnp.pad(b1f, (0, L_p - L))
    b2f = jnp.pad(b2f, (0, Cout_p - Cout))
    bsf = jnp.pad(bsf, (0, Cout_p - Cout))

    # Fuse first Linear + skip Linear (same input x) into one wide matmul.
    w_fused = jnp.concatenate([w1f, wsf], axis=1).astype(compute_dtype)   # (Cin_p, L_p+Cout_p)
    b_fused = jnp.concatenate([b1f, bsf])[None, :].astype(jnp.float32)    # (1, L_p+Cout_p)
    w2c = w2f.astype(compute_dtype)                                       # (L_p, Cout_p)
    b2c = b2f[None, :].astype(jnp.float32)                                # (1, Cout_p)

    # Pad batch to a multiple of the batch tile (sublane-aligned; 16 rows for bf16 packing).
    tb = min(tile_b, _round_up(B, 16))
    B_p = _round_up(B, tb)
    x_p = jnp.pad(x, ((0, B_p - B), (0, Cin_p - Cin))).astype(compute_dtype)

    meta = dict(B=B, Cout=Cout, B_p=B_p, tb=tb, Cin_p=Cin_p, L_p=L_p, Cout_p=Cout_p)
    return (x_p, w_fused, b_fused, w2c, b2c), meta


def _double_layer_mlp_kernel(x_ref, wf_ref, bf_ref, w2_ref, b2_ref, o_ref, *, latent_p):
    x = x_ref[...]                                                   # (TILE_B, Cin_p) bf16
    # Fused first matmul: [h_pre | skip] = x @ [w1' | ws'] + [b1' | bs']   (f32 accumulation)
    z = jnp.dot(x, wf_ref[...], preferred_element_type=jnp.float32) + bf_ref[...]
    h = jnp.maximum(z[:, :latent_p], 0.0)                            # ReLU (main branch only)
    skip = z[:, latent_p:]
    out = (jnp.dot(h.astype(w2_ref.dtype), w2_ref[...],
                   preferred_element_type=jnp.float32)
           + b2_ref[...] + skip)
    o_ref[...] = out.astype(o_ref.dtype)


def double_layer_mlp(x, params, *, tile_b=DEFAULT_TILE_B, compute_dtype=jnp.bfloat16):
    (x_p, w_fused, b_fused, w2c, b2c), m = _prepare_inputs(x, params, compute_dtype, tile_b)
    B, Cout = m["B"], m["Cout"]
    B_p, tb = m["B_p"], m["tb"]
    Cin_p, L_p, Cout_p = m["Cin_p"], m["L_p"], m["Cout_p"]
    Nf = L_p + Cout_p

    kernel = functools.partial(_double_layer_mlp_kernel, latent_p=L_p)

    itemsize = jnp.dtype(compute_dtype).itemsize
    flops = 2 * B_p * (Cin_p * Nf + L_p * Cout_p)
    bytes_accessed = (x_p.size * itemsize
                      + w_fused.size * itemsize + w2c.size * itemsize
                      + b_fused.size * 4 + b2c.size * 4
                      + B_p * Cout_p * 4)

    out_p = pl.pallas_call(
        kernel,
        out_shape=jax.ShapeDtypeStruct((B_p, Cout_p), jnp.float32),
        grid=(B_p // tb,),
        in_specs=[
            pl.BlockSpec((tb, Cin_p), lambda i: (i, 0)),       # x: tiled over batch (pipelined)
            pl.BlockSpec((Cin_p, Nf), lambda i: (0, 0)),       # fused [w1'|ws']: resident
            pl.BlockSpec((1, Nf), lambda i: (0, 0)),           # fused [b1'|bs']: resident
            pl.BlockSpec((L_p, Cout_p), lambda i: (0, 0)),     # w2': resident
            pl.BlockSpec((1, Cout_p), lambda i: (0, 0)),       # b2': resident
        ],
        out_specs=pl.BlockSpec((tb, Cout_p), lambda i: (i, 0)),
        compiler_params=pltpu.CompilerParams(
            dimension_semantics=("parallel",),
            vmem_limit_bytes=48 * 1024 * 1024,
        ),
        cost_estimate=pl.CostEstimate(
            flops=flops, transcendentals=0, bytes_accessed=bytes_accessed),
    )(x_p, w_fused, b_fused, w2c, b2c)

    return out_p[:B, :Cout]


def folded_reference(x, params, *, tile_b=DEFAULT_TILE_B, compute_dtype=jnp.bfloat16):
    """Plain-jnp model of the exact folded/padded/quantized computation the kernel performs."""
    (x_p, w_fused, b_fused, w2c, b2c), m = _prepare_inputs(x, params, compute_dtype, tile_b)
    L_p = m["L_p"]
    z = jnp.dot(x_p.astype(jnp.float32), w_fused.astype(jnp.float32),
                preferred_element_type=jnp.float32) + b_fused
    h = jnp.maximum(z[:, :L_p], 0.0).astype(compute_dtype)
    out = (jnp.dot(h.astype(jnp.float32), w2c.astype(jnp.float32),
                   preferred_element_type=jnp.float32)
           + b2c + z[:, L_p:])
    return out[:m["B"], :m["Cout"]]


def reference(x, params):
    """Full-precision (f32) reference of the original module (eval-mode BN)."""
    bn1_s, bn1_b = _fold_bn(params["bn1_g"], params["bn1_b"], params["bn1_rm"], params["bn1_rv"])
    bn2_s, bn2_b = _fold_bn(params["bn2_g"], params["bn2_b"], params["bn2_rm"], params["bn2_rv"])
    bns_s, bns_b = _fold_bn(params["bns_g"], params["bns_b"], params["bns_rm"], params["bns_rv"])
    h = x * bn1_s + bn1_b
    h = h @ params["w1"].T + params["b1"]
    h = jnp.maximum(h, 0.0)
    h = h * bn2_s + bn2_b
    mlp_out = h @ params["w2"].T + params["b2"]
    s = x * bns_s + bns_b
    skip_out = s @ params["ws"].T + params["bs"]
    return mlp_out + skip_out


def make_params(key, in_channels, out_channels, expansion_ratio):
    latent = in_channels * expansion_ratio
    ks = jax.random.split(key, 16)
    f32 = jnp.float32

    def u(k, shape, lo=-0.5, hi=0.5):
        return jax.random.uniform(k, shape, dtype=f32, minval=lo, maxval=hi)

    return {
        # mlp[0] BatchNorm1d(in_channels)
        "bn1_g": u(ks[0], (in_channels,), 0.5, 1.5),
        "bn1_b": u(ks[1], (in_channels,)),
        "bn1_rm": u(ks[2], (in_channels,)),
        "bn1_rv": u(ks[3], (in_channels,), 0.5, 1.5),
        # mlp[1] Linear(in_channels, latent) — torch layout (out, in)
        "w1": u(ks[4], (latent, in_channels)),
        "b1": u(ks[5], (latent,)),
        # mlp[3] BatchNorm1d(latent)
        "bn2_g": u(ks[6], (latent,), 0.5, 1.5),
        "bn2_b": u(ks[7], (latent,)),
        "bn2_rm": u(ks[8], (latent,)),
        "bn2_rv": u(ks[9], (latent,), 0.5, 1.5),
        # mlp[4] Linear(latent, out_channels)
        "w2": u(ks[10], (out_channels, latent)),
        "b2": u(ks[11], (out_channels,)),
        # skip[0] BatchNorm1d(in_channels)
        "bns_g": u(ks[12], (in_channels,), 0.5, 1.5),
        "bns_b": u(ks[13], (in_channels,)),
        "bns_rm": u(ks[14], (in_channels,)),
        "bns_rv": u(ks[15], (in_channels,), 0.5, 1.5),
        # skip[1] Linear(in_channels, out_channels)
        "ws": u(jax.random.fold_in(key, 100), (out_channels, in_channels)),
        "bs": u(jax.random.fold_in(key, 101), (out_channels,)),
    }


if __name__ == "__main__":
    in_channels, out_channels, expansion_ratio = 16, 32, 4
    batch = 8

    key = jax.random.PRNGKey(0)
    kx, kp = jax.random.split(key)
    x = jax.random.normal(kx, (batch, in_channels), dtype=jnp.float32)
    params = make_params(kp, in_channels, out_channels, expansion_ratio)

    out = jax.block_until_ready(double_layer_mlp(x, params))
    assert out.shape == (batch, out_channels)

    # Tight check vs a jnp model of the exact folded/quantized computation (same bf16 operands).
    ref_folded = folded_reference(x, params)
    assert jnp.allclose(out, ref_folded, atol=2e-3, rtol=2e-3), "mismatch vs folded/quantized reference"

    # Loose check vs the full-precision module reference (bf16 operand quantization error).
    ref_full = reference(x, params)
    assert jnp.allclose(out, ref_full, atol=5e-1, rtol=1e-1), "mismatch vs f32 module reference"

    print("KERNEL_OK")
</pallas_src>

<mosaic_0001>
module attributes {stable_mosaic.version = 11 : i64} {
  func.func @_double_layer_mlp_kernel(%arg0: i32, %arg1: memref<16x128xbf16, #tpu.memory_space<vmem>>, %arg2: memref<128x256xbf16, #tpu.memory_space<vmem>>, %arg3: memref<1x256xf32, #tpu.memory_space<vmem>>, %arg4: memref<128x128xbf16, #tpu.memory_space<vmem>>, %arg5: memref<1x128xf32, #tpu.memory_space<vmem>>, %arg6: memref<16x128xf32, #tpu.memory_space<vmem>>) attributes {dimension_semantics = [#tpu.dimension_semantics<parallel>], iteration_bounds = array<i64: 1>, scalar_prefetch = 0 : i64, scratch_operands = 0 : i64, tpu.core_type = #tpu.core_type<tc>, window_params = [{transform_indices = @transform_0, window_bounds = array<i64: 16, 128>}, {pipeline_mode = #tpu.pipeline_mode<synchronous>, transform_indices = @transform_1, window_bounds = array<i64: 128, 256>}, {pipeline_mode = #tpu.pipeline_mode<synchronous>, transform_indices = @transform_2, window_bounds = array<i64: 1, 256>}, {pipeline_mode = #tpu.pipeline_mode<synchronous>, transform_indices = @transform_3, window_bounds = array<i64: 128, 128>}, {pipeline_mode = #tpu.pipeline_mode<synchronous>, transform_indices = @transform_4, window_bounds = array<i64: 1, 128>}, {transform_indices = @transform_5, window_bounds = array<i64: 16, 128>}]} {
    %c0 = arith.constant 0 : index
    %c0_0 = arith.constant 0 : index
    %0 = vector.load %arg1[%c0, %c0_0] : memref<16x128xbf16, #tpu.memory_space<vmem>>, vector<16x128xbf16>
    %c0_1 = arith.constant 0 : index
    %c0_2 = arith.constant 0 : index
    %1 = vector.load %arg2[%c0_1, %c0_2] : memref<128x256xbf16, #tpu.memory_space<vmem>>, vector<128x256xbf16>
    %cst = arith.constant dense<0.000000e+00> : vector<16x256xf32>
    %2 = tpu.matmul %0, %1, %cst {dimension_numbers = #tpu.dot_dimension_numbers<[1], [0], [0], [1], [0, 0, 1, 1], [], []>} : vector<16x128xbf16>, vector<128x256xbf16>, vector<16x256xf32> -> vector<16x256xf32>
    %c0_3 = arith.constant 0 : index
    %c0_4 = arith.constant 0 : index
    %3 = vector.load %arg3[%c0_3, %c0_4] : memref<1x256xf32, #tpu.memory_space<vmem>>, vector<1x256xf32>
    %4 = vector.broadcast %3 : vector<1x256xf32> to vector<16x256xf32>
    %5 = arith.addf %2, %4 : vector<16x256xf32>
    %6 = vector.extract_strided_slice %5 {offsets = [0, 0], sizes = [16, 128], strides = [1, 1]} : vector<16x256xf32> to vector<16x128xf32>
    %cst_5 = arith.constant 0.000000e+00 : f32
    %7 = vector.broadcast %cst_5 : f32 to vector<16x128xf32>
    %8 = arith.maximumf %6, %7 : vector<16x128xf32>
    %9 = vector.extract_strided_slice %5 {offsets = [0, 128], sizes = [16, 128], strides = [1, 1]} : vector<16x256xf32> to vector<16x128xf32>
    %10 = arith.truncf %8 : vector<16x128xf32> to vector<16x128xbf16>
    %c0_6 = arith.constant 0 : index
    %c0_7 = arith.constant 0 : index
    %11 = vector.load %arg4[%c0_6, %c0_7] : memref<128x128xbf16, #tpu.memory_space<vmem>>, vector<128x128xbf16>
    %cst_8 = arith.constant dense<0.000000e+00> : vector<16x128xf32>
    %12 = tpu.matmul %10, %11, %cst_8 {dimension_numbers = #tpu.dot_dimension_numbers<[1], [0], [0], [1], [0, 0, 1, 1], [], []>} : vector<16x128xbf16>, vector<128x128xbf16>, vector<16x128xf32> -> vector<16x128xf32>
    %c0_9 = arith.constant 0 : index
    %c0_10 = arith.constant 0 : index
    %13 = vector.load %arg5[%c0_9, %c0_10] : memref<1x128xf32, #tpu.memory_space<vmem>>, vector<1x128xf32>
    %14 = vector.broadcast %13 : vector<1x128xf32> to vector<16x128xf32>
    %15 = arith.addf %12, %14 : vector<16x128xf32>
    %16 = arith.addf %15, %9 : vector<16x128xf32>
    %c0_11 = arith.constant 0 : index
    %c0_12 = arith.constant 0 : index
    %17 = vector.load %arg6[%c0_11, %c0_12] : memref<16x128xf32, #tpu.memory_space<vmem>>, vector<16x128xf32>
    tpu.vector_store %arg6[%c0_11, %c0_12], %16 {strides = array<i32>} : memref<16x128xf32, #tpu.memory_space<vmem>>, vector<16x128xf32>,
    return
  }
  func.func @transform_0(%arg0: i32) -> (i32, i32) {
    %c0_i32 = arith.constant 0 : i32
    %c0_i32_0 = arith.constant 0 : i32
    return %arg0, %c0_i32 : i32, i32
  }
  func.func @transform_1(%arg0: i32) -> (i32, i32) {
    %c0_i32 = arith.constant 0 : i32
    %c0_i32_0 = arith.constant 0 : i32
    %c0_i32_1 = arith.constant 0 : i32
    return %c0_i32, %c0_i32_0 : i32, i32
  }
  func.func @transform_2(%arg0: i32) -> (i32, i32) {
    %c0_i32 = arith.constant 0 : i32
    %c0_i32_0 = arith.constant 0 : i32
    %c0_i32_1 = arith.constant 0 : i32
    return %c0_i32, %c0_i32_0 : i32, i32
  }
  func.func @transform_3(%arg0: i32) -> (i32, i32) {
    %c0_i32 = arith.constant 0 : i32
    %c0_i32_0 = arith.constant 0 : i32
    %c0_i32_1 = arith.constant 0 : i32
    return %c0_i32, %c0_i32_0 : i32, i32
  }
  func.func @transform_4(%arg0: i32) -> (i32, i32) {
    %c0_i32 = arith.constant 0 : i32
    %c0_i32_0 = arith.constant 0 : i32
    %c0_i32_1 = arith.constant 0 : i32
    return %c0_i32, %c0_i32_0 : i32, i32
  }
  func.func @transform_5(%arg0: i32) -> (i32, i32) {
    %c0_i32 = arith.constant 0 : i32
    %c0_i32_0 = arith.constant 0 : i32
    return %arg0, %c0_i32 : i32, i32
  }
}

</mosaic_0001>

<llo_original>
// kernel: tpu_custom_call.1
$region0: #{tpu_custom_call.1}
  #allocation0 [shape = 'u32[]', space=smem, size = 0x4, offset = 0x4, fixed_abs, tag = 'smem constant byte address 0x4 - core index']
  #allocation1 [shape = 'u32[72,128]{1,0:T(1,128)}', space=vmem, size = 0x9000, scoped, tag = 'internal scratch']
  %s0 = inlined_call_operand.hbm [shape: bf16[16,128], index: 0, kind: input, shape index: {}]
  %s1 = inlined_call_operand.hbm [shape: bf16[128,256], index: 1, kind: input, shape index: {}]
  %s2 = inlined_call_operand.hbm [shape: f32[1,256], index: 2, kind: input, shape index: {}]
  %s3 = inlined_call_operand.hbm [shape: bf16[128,128], index: 3, kind: input, shape index: {}]
  %s4 = inlined_call_operand.vmem [shape: f32[1,128], index: 4, kind: input, shape index: {}]
  %s5 = inlined_call_operand.hbm [shape: f32[16,128], index: 5, kind: output, shape index: {}]
  %s6 = sld [smem:[#allocation0]]
  $region46: #{tpu_custom_call.1} parent=0
    _
  %s8 = ssub.s32 1, %s6
  %s9 = scalar_select 0, %s8, %s6
  $region1: #{tpu_custom_call.1} parent=0
    #allocation2 [shape = 'u8[4096]{0}', space=vmem, size = 0x1000, scoped, tag = 'input window, operand 0, single buffered']
    #allocation3 [shape = 's32[1]{0}', space=sflag, size = 0x4, scoped, tag = 'scoped memory for tpu_custom_call.1']
    #allocation4 [shape = 's32[1]{0}', space=sflag, size = 0x4, scoped, tag = 'scoped memory for tpu_custom_call.1']
    #allocation5 [shape = 'u8[65536]{0}', space=vmem, size = 0x10000, scoped, tag = 'input window, operand 1, single buffered']
    #allocation6 [shape = 's32[1]{0}', space=sflag, size = 0x4, scoped, tag = 'scoped memory for tpu_custom_call.1']
    #allocation7 [shape = 'u8[1024]{0}', space=vmem, size = 0x400, scoped, tag = 'input window, operand 2, single buffered']
    #allocation8 [shape = 'u8[32768]{0}', space=vmem, size = 0x8000, scoped, tag = 'input window, operand 3, single buffered']
    #allocation9 [shape = 's32[1]{0}', space=sflag, size = 0x4, scoped, tag = 'scoped memory for tpu_custom_call.1']
    #allocation10 [shape = 'u8[8192]{0}', space=vmem, size = 0x2000, scoped, tag = 'output window, operand 0, single buffered']
    %10 = vsyncpa [#allocation3], 0
    %11 = vsyncpa [#allocation6], 0
    %12 = vsyncpa [#allocation9], 0
    %13 = vsyncpa [#allocation4], 0
    // Predicated region
    $region2: #{tpu_custom_call.1} parent=1 // pred_check
      _
    $region3: #{tpu_custom_call.1} parent=1 // pred_check_branch
      %15 = sbr.rel (0) target = $region5
    $region4: #{tpu_custom_call.1} parent=1 // pred_region
      %17 = vsyncadd [#allocation3], 0
      %s18 = sshll.u32 %s0, 4
      %s19 = int_to_ptr.hbm [resolvable:$true] %s18
      %s20 = sshll.u32 [#allocation2], 4
      %s21 = int_to_ptr.vmem [resolvable:$true] %s20
      %26 = dma.hbm_to_vmem [thread:$0]  %s19, 128, %s21, [#allocation3], 64, 64, 4
    $region5: #{tpu_custom_call.1} parent=1 // pred_fallthru
      _
    // Predicated region
    $region6: #{tpu_custom_call.1} parent=1 // pred_check
      _
    $region7: #{tpu_custom_call.1} parent=1 // pred_check_branch
      %28 = sbr.rel (0) target = $region9
    $region8: #{tpu_custom_call.1} parent=1 // pred_region
      %30 = vsyncadd [#allocation6], 0
      %s31 = sshll.u32 %s1, 4
      %s32 = int_to_ptr.hbm [resolvable:$true] %s31
      %s33 = sshll.u32 [#allocation5], 4
      %s34 = int_to_ptr.vmem [resolvable:$true] %s33
      %39 = dma.hbm_to_vmem [thread:$0]  %s32, 2048, %s34, [#allocation6], 128, 128, 8
    $region9: #{tpu_custom_call.1} parent=1 // pred_fallthru
      _
    // Predicated region
    $region10: #{tpu_custom_call.1} parent=1 // pred_check
      _
    $region11: #{tpu_custom_call.1} parent=1 // pred_check_branch
      %41 = sbr.rel (0) target = $region13
    $region12: #{tpu_custom_call.1} parent=1 // pred_region
      %43 = vsyncadd [#allocation6], 0
      %s45 = sshll.u32 %s2, 4
      %s46 = int_to_ptr.hbm [resolvable:$true] %s45
      %s47 = sshll.u32 [#allocation7], 4
      %s48 = int_to_ptr.vmem [resolvable:$true] %s47
      %50 = dma.hbm_to_vmem [thread:$0]  %s46, 32, %s48, [#allocation6]
    $region13: #{tpu_custom_call.1} parent=1 // pred_fallthru
      _
    // Predicated region
    $region14: #{tpu_custom_call.1} parent=1 // pred_check
      _
    $region15: #{tpu_custom_call.1} parent=1 // pred_check_branch
      %52 = sbr.rel (0) target = $region17
    $region16: #{tpu_custom_call.1} parent=1 // pred_region
      %54 = vsyncadd [#allocation9], 0
      %s55 = sshll.u32 %s3, 4
      %s56 = int_to_ptr.hbm [resolvable:$true] %s55
      %s57 = sshll.u32 [#allocation8], 4
      %s58 = int_to_ptr.vmem [resolvable:$true] %s57
      %63 = dma.hbm_to_vmem [thread:$0]  %s56, 1024, %s58, [#allocation9], 64, 64, 4
    $region17: #{tpu_custom_call.1} parent=1 // pred_fallthru
      _
    // Predicated region
    $region18: #{tpu_custom_call.1} parent=1 // pred_check
      _
    $region19: #{tpu_custom_call.1} parent=1 // pred_check_branch
      %65 = sbr.rel (0) target = $region21
    $region20: #{tpu_custom_call.1} parent=1 // pred_region
      _
    $region21: #{tpu_custom_call.1} parent=1 // pred_fallthru
      _
    // Predicated region
    $region22: #{tpu_custom_call.1} parent=1 // pred_check
      _
    $region23: #{tpu_custom_call.1} parent=1 // pred_check_branch
      %67 = sbr.rel (0) target = $region25
    $region24: #{tpu_custom_call.1} parent=1 // pred_region
      %69 = dma.done [#allocation3], 128
    $region25: #{tpu_custom_call.1} parent=1 // pred_fallthru
      _
    // Predicated region
    $region26: #{tpu_custom_call.1} parent=1 // pred_check
      _
    $region27: #{tpu_custom_call.1} parent=1 // pred_check_branch
      %71 = sbr.rel (0) target = $region29
    $region28: #{tpu_custom_call.1} parent=1 // pred_region
      %73 = dma.done [#allocation6], 2048
    $region29: #{tpu_custom_call.1} parent=1 // pred_fallthru
      _
    // Predicated region
    $region30: #{tpu_custom_call.1} parent=1 // pred_check
      _
    $region31: #{tpu_custom_call.1} parent=1 // pred_check_branch
      %75 = sbr.rel (0) target = $region33
    $region32: #{tpu_custom_call.1} parent=1 // pred_region
      %77 = dma.done [#allocation6], 32
    $region33: #{tpu_custom_call.1} parent=1 // pred_fallthru
      _
    // Predicated region
    $region34: #{tpu_custom_call.1} parent=1 // pred_check
      _
    $region35: #{tpu_custom_call.1} parent=1 // pred_check_branch
      %79 = sbr.rel (0) target = $region37
    $region36: #{tpu_custom_call.1} parent=1 // pred_region
      %81 = dma.done [#allocation9], 1024
    $region37: #{tpu_custom_call.1} parent=1 // pred_fallthru
      _
    %v82 = vld [vmem:[#allocation2] sm:$0xf]
    %v83 = vld [vmem:[#allocation2 + $0x4] sm:$0xf]
    %v84 = vld [vmem:[#allocation5] sm:$0xff]
    %v85 = vld [vmem:[#allocation5 + $0x8] sm:$0xff]
    %v86 = vld [vmem:[#allocation5 + $0x10] sm:$0xff]
    %v87 = vld [vmem:[#allocation5 + $0x18] sm:$0xff]
    %v88 = vld [vmem:[#allocation5 + $0x20] sm:$0xff]
    %v89 = vld [vmem:[#allocation5 + $0x28] sm:$0xff]
    %v90 = vld [vmem:[#allocation5 + $0x30] sm:$0xff]
    %v91 = vld [vmem:[#allocation5 + $0x38] sm:$0xff]
    %v92 = vld [vmem:[#allocation5 + $0x40] sm:$0xff]
    %v93 = vld [vmem:[#allocation5 + $0x48] sm:$0xff]
    %v94 = vld [vmem:[#allocation5 + $0x50] sm:$0xff]
    %v95 = vld [vmem:[#allocation5 + $0x58] sm:$0xff]
    %v96 = vld [vmem:[#allocation5 + $0x60] sm:$0xff]
    %v97 = vld [vmem:[#allocation5 + $0x68] sm:$0xff]
    %v98 = vld [vmem:[#allocation5 + $0x70] sm:$0xff]
    %v99 = vld [vmem:[#allocation5 + $0x78] sm:$0xff]
    %v100 = vld [vmem:[#allocation7] sm:$0x3]
    %v102 = vperm.slane %v100, 0
    %v103 = vperm.slane %v100, 1
    %v108 = vunpack.c.l.b16 %v82
    %v109 = vunpack.c.l.b16 %v83
    %v110 = vpack.c.b16 %v109, %v108
    %v128 = vunpack.c.l.b16 %v84
    %v129 = vunpack.c.h.b16 %v84
    %v130 = vunpack.c.l.b16 %v85
    %v131 = vunpack.c.h.b16 %v85
    %v132 = vunpack.c.l.b16 %v86
    %v133 = vunpack.c.h.b16 %v86
    %v134 = vunpack.c.l.b16 %v87
    %v135 = vunpack.c.h.b16 %v87
    %v136 = vunpack.c.l.b16 %v88
    %v137 = vunpack.c.h.b16 %v88
    %v138 = vunpack.c.l.b16 %v89
    %v139 = vunpack.c.h.b16 %v89
    %v140 = vunpack.c.l.b16 %v90
    %v141 = vunpack.c.h.b16 %v90
    %v142 = vunpack.c.l.b16 %v91
    %v143 = vunpack.c.h.b16 %v91
    %v144 = vunpack.c.l.b16 %v92
    %v145 = vunpack.c.h.b16 %v92
    %v146 = vunpack.c.l.b16 %v93
    %v147 = vunpack.c.h.b16 %v93
    %v148 = vunpack.c.l.b16 %v94
    %v149 = vunpack.c.h.b16 %v94
    %v150 = vunpack.c.l.b16 %v95
    %v151 = vunpack.c.h.b16 %v95
    %v152 = vunpack.c.l.b16 %v96
    %v153 = vunpack.c.h.b16 %v96
    %v154 = vunpack.c.l.b16 %v97
    %v155 = vunpack.c.h.b16 %v97
    %v156 = vunpack.c.l.b16 %v98
    %v157 = vunpack.c.h.b16 %v98
    %v158 = vunpack.c.l.b16 %v99
    %v159 = vunpack.c.h.b16 %v99
    %v160 = vpack.c.b16 %v130, %v128
    %v161 = vpack.c.b16 %v131, %v129
    %v162 = vpack.c.b16 %v134, %v132
    %v163 = vpack.c.b16 %v135, %v133
    %v164 = vpack.c.b16 %v138, %v136
    %v165 = vpack.c.b16 %v139, %v137
    %v166 = vpack.c.b16 %v142, %v140
    %v167 = vpack.c.b16 %v143, %v141
    %v168 = vpack.c.b16 %v146, %v144
    %v169 = vpack.c.b16 %v147, %v145
    %v170 = vpack.c.b16 %v150, %v148
    %v171 = vpack.c.b16 %v151, %v149
    %v172 = vpack.c.b16 %v154, %v152
    %v173 = vpack.c.b16 %v155, %v153
    %v174 = vpack.c.b16 %v158, %v156
    %v175 = vpack.c.b16 %v159, %v157
    %192 = vmatpush.bf16.msra.mxu0 %v174
    %193 = vmatpush.bf16.msra.mxu0 %v172
    %194 = vmatpush.bf16.msra.mxu0 %v170
    %195 = vmatpush.bf16.msra.mxu0 %v168
    %196 = vmatpush.bf16.msra.mxu0 %v166
    %197 = vmatpush.bf16.msra.mxu0 %v164
    %198 = vmatpush.bf16.msra.mxu0 %v162
    %199 = vmatpush.bf16.msra.mxu0 %v160
    %200 = vmatmul.bf16.gmra.mxu0 %v110
    %v201 = vpop.f32.mrf.mxu0
    %v202 = vadd.f32 %v102, %v201
    %v203 = vpop.f32.mrf.mxu0
    %v204 = vadd.f32 %v102, %v203
    %205 = vdwg.mxu0
    %206 = vmatpush.bf16.msra.mxu0 %v175
    %207 = vmatpush.bf16.msra.mxu0 %v173
    %208 = vmatpush.bf16.msra.mxu0 %v171
    %209 = vmatpush.bf16.msra.mxu0 %v169
    %210 = vmatpush.bf16.msra.mxu0 %v167
    %211 = vmatpush.bf16.msra.mxu0 %v165
    %212 = vmatpush.bf16.msra.mxu0 %v163
    %213 = vmatpush.bf16.msra.mxu0 %v161
    %214 = vmatmul.bf16.gmra.mxu0 %v110
    %v215 = vpop.f32.mrf.mxu0
    %v216 = vadd.f32 %v103, %v215
    %v217 = vpop.f32.mrf.mxu0
    %v218 = vadd.f32 %v103, %v217
    %219 = vdwg.mxu0
    %v220 = vmax.f32 %v202, 0.0
    %v221 = vmax.f32 %v204, 0.0
    %v222 = vpack.c.bf16 %v221, %v220
    %v223 = vld [vmem:[#allocation8] sm:$0xf]
    %v224 = vld [vmem:[#allocation8 + $0x4] sm:$0xf]
    %v225 = vld [vmem:[#allocation8 + $0x8] sm:$0xf]
    %v226 = vld [vmem:[#allocation8 + $0xc] sm:$0xf]
    %v227 = vld [vmem:[#allocation8 + $0x10] sm:$0xf]
    %v228 = vld [vmem:[#allocation8 + $0x14] sm:$0xf]
    %v229 = vld [vmem:[#allocation8 + $0x18] sm:$0xf]
    %v230 = vld [vmem:[#allocation8 + $0x1c] sm:$0xf]
    %v231 = vld [vmem:[#allocation8 + $0x20] sm:$0xf]
    %v232 = vld [vmem:[#allocation8 + $0x24] sm:$0xf]
    %v233 = vld [vmem:[#allocation8 + $0x28] sm:$0xf]
    %v234 = vld [vmem:[#allocation8 + $0x2c] sm:$0xf]
    %v235 = vld [vmem:[#allocation8 + $0x30] sm:$0xf]
    %v236 = vld [vmem:[#allocation8 + $0x34] sm:$0xf]
    %v237 = vld [vmem:[#allocation8 + $0x38] sm:$0xf]
    %v238 = vld [vmem:[#allocation8 + $0x3c] sm:$0xf]
    %v239 = vld [vmem:[%s4] sm:$0x1]
    %v241 = vperm.slane %v239, 0
    %v259 = vunpack.c.l.b16 %v223
    %v260 = vunpack.c.l.b16 %v224
    %v261 = vunpack.c.l.b16 %v225
    %v262 = vunpack.c.l.b16 %v226
    %v263 = vunpack.c.l.b16 %v227
    %v264 = vunpack.c.l.b16 %v228
    %v265 = vunpack.c.l.b16 %v229
    %v266 = vunpack.c.l.b16 %v230
    %v267 = vunpack.c.l.b16 %v231
    %v268 = vunpack.c.l.b16 %v232
    %v269 = vunpack.c.l.b16 %v233
    %v270 = vunpack.c.l.b16 %v234
    %v271 = vunpack.c.l.b16 %v235
    %v272 = vunpack.c.l.b16 %v236
    %v273 = vunpack.c.l.b16 %v237
    %v274 = vunpack.c.l.b16 %v238
    %v275 = vpack.c.b16 %v260, %v259
    %v276 = vpack.c.b16 %v262, %v261
    %v277 = vpack.c.b16 %v264, %v263
    %v278 = vpack.c.b16 %v266, %v265
    %v279 = vpack.c.b16 %v268, %v267
    %v280 = vpack.c.b16 %v270, %v269
    %v281 = vpack.c.b16 %v272, %v271
    %v282 = vpack.c.b16 %v274, %v273
    %291 = vmatpush.bf16.msra.mxu0 %v282
    %292 = vmatpush.bf16.msra.mxu0 %v281
    %293 = vmatpush.bf16.msra.mxu0 %v280
    %294 = vmatpush.bf16.msra.mxu0 %v279
    %295 = vmatpush.bf16.msra.mxu0 %v278
    %296 = vmatpush.bf16.msra.mxu0 %v277
    %297 = vmatpush.bf16.msra.mxu0 %v276
    %298 = vmatpush.bf16.msra.mxu0 %v275
    %299 = vmatmul.bf16.gmra.mxu0 %v222
    %v300 = vpop.f32.mrf.mxu0
    %v301 = vadd.f32 %v241, %v300
    %v302 = vpop.f32.mrf.mxu0
    %v303 = vadd.f32 %v241, %v302
    %304 = vdwg.mxu0
    %v305 = vadd.f32 %v301, %v216
    %v306 = vadd.f32 %v303, %v218
    %307 = vst [vmem:[#allocation10] sm:$0xff] %v305
    %308 = vst [vmem:[#allocation10 + $0x8] sm:$0xff] %v306
    // Predicated region
    $region38: #{tpu_custom_call.1} parent=1 // pred_check
      _
    $region39: #{tpu_custom_call.1} parent=1 // pred_check_branch
      %310 = sbr.rel (0) target = $region41
    $region40: #{tpu_custom_call.1} parent=1 // pred_region
      %312 = vsyncadd [#allocation4], 0
      %s313 = sshll.u32 [#allocation10], 4
      %s314 = int_to_ptr.vmem [resolvable:$true] %s313
      %s315 = sshll.u32 %s5, 4
      %s316 = int_to_ptr.hbm [resolvable:$true] %s315
      %321 = dma.vmem_to_hbm [thread:$0]  %s314, 256, %s316, [#allocation4], 128, 128, 8
    $region41: #{tpu_custom_call.1} parent=1 // pred_fallthru
      _
    // Predicated region
    $region42: #{tpu_custom_call.1} parent=1 // pred_check
      _
    $region43: #{tpu_custom_call.1} parent=1 // pred_check_branch
      %323 = sbr.rel (0) target = $region45
    $region44: #{tpu_custom_call.1} parent=1 // pred_region
      %325 = dma.done [#allocation4], 256
    $region45: #{tpu_custom_call.1} parent=1 // pred_fallthru
      _
    %326 = vsyncpa [#allocation3], 1
    %327 = vsyncpa [#allocation6], 1
    %328 = vsyncpa [#allocation9], 1
    %329 = vsyncpa [#allocation4], 1

</llo_original>
